<compile_context>
chip_gen: v5e
topology: v5e:2x2
jax: 0.10.0
libtpu: 0.0.40
codegen_flags: <defaults>
</compile_context>

<pallas_src>
import functools

import jax
import jax.numpy as jnp
from jax.experimental import pallas as pl
from jax.experimental.pallas import tpu as pltpu


def _mpc_loss_kernel(k_ref, lq_ref, lk_ref, cnt_ref, o_ref, *,
                     block_rows, n_valid, n_padded, inv_temperature):
    # k_ref  : (Np, D)  bf16 row-normalized feats (keys), resident across the grid
    # lq_ref : (Br, 1)  f32 labels for this row block
    # lk_ref : (1, Np)  f32 labels for all (padded) columns
    # cnt_ref: (Br, 1)  f32 positives-per-row counts (precomputed in the wrapper)
    # o_ref  : (Br, 1)  f32 per-row loss output for this block
    pid = pl.program_id(0)
    row0 = pl.multiple_of(pid * block_rows, block_rows)

    # Query rows are a slice of the already-normalized resident keys.
    q = k_ref[pl.ds(row0, block_rows), :]                          # (Br, D) bf16
    k = k_ref[...]                                                 # (Np, D) bf16

    # Single MXU contraction over D (no explicit transpose), f32 accumulation.
    logits = jax.lax.dot_general(
        q, k, (((1,), (1,)), ((), ())),
        preferred_element_type=jnp.float32) * inv_temperature      # (Br, Np) f32

    # Mask padded key columns out of the softmax (static no-op when no padding).
    if n_padded != n_valid:
        col_ids = jax.lax.broadcasted_iota(jnp.int32, logits.shape, 1)
        logits = jnp.where(col_ids < n_valid, logits, -1e30)

    # Numerically stable, fused log-softmax + multi-positive weighted sum:
    #   loss_i = (lse_i * cnt_i - sum_j mask_ij * shifted_ij) / max(cnt_i, 1)
    row_max = jnp.max(logits, axis=1, keepdims=True)               # (Br, 1)
    shifted = logits - row_max                                     # (Br, Np)
    sum_exp = jnp.sum(jnp.exp(shifted), axis=1, keepdims=True)     # (Br, 1)
    lse = jnp.log(sum_exp)                                         # (Br, 1)

    # Positive-pair mask from labels; padded columns carry a huge sentinel label
    # so they never count as positives for valid rows.
    diff = jnp.abs(lq_ref[...] - lk_ref[...])                      # (Br, Np)
    pos_dot = jnp.sum(jnp.where(diff < 2.0, shifted, 0.0),
                      axis=1, keepdims=True)                       # (Br, 1)

    cnt = cnt_ref[...]                                             # (Br, 1)
    inv_denom = pl.reciprocal(jnp.maximum(cnt, 1.0), approx=False)  # EUP
    o_ref[...] = (lse * cnt - pos_dot) * inv_denom                 # (Br, 1)


def multi_pos_con_loss(feats, labels, temperature=1.0, block_rows=None):
    """feats: (N, D) float; labels: (N,) numeric.
    Returns the scalar f32 loss matching MultiPosConLoss(temperature)(feats, labels)."""
    n, d = feats.shape

    # --- one-time, mem-bound preprocessing in the wrapper -------------------
    feats_f32 = feats.astype(jnp.float32)
    norm = jnp.sqrt(jnp.sum(feats_f32 * feats_f32, axis=-1, keepdims=True))
    feats_n = (feats_f32 / jnp.maximum(norm, 1e-12)).astype(jnp.bfloat16)

    labels_f = labels.astype(jnp.float32)
    counts = jnp.sum(
        (jnp.abs(labels_f[:, None] - labels_f[None, :]) < 2.0).astype(jnp.float32),
        axis=1, keepdims=True)                                      # (n, 1)

    # --- tiling / padding ----------------------------------------------------
    if block_rows is None:
        # 256 rows matches the MXU nicely on v5e/v6e/v7x; small N -> one block.
        block_rows = 256 if n > 256 else max(8, -(-n // 8) * 8)
    n_pad = -(-n // block_rows) * block_rows

    if n_pad != n:
        pad = n_pad - n
        feats_n = jnp.pad(feats_n, ((0, pad), (0, 0)))              # zero rows
        labels_f = jnp.pad(labels_f, ((0, pad),), constant_values=1e9)  # sentinel
        counts = jnp.pad(counts, ((0, pad), (0, 0)), constant_values=1.0)

    labels_col = labels_f.reshape(n_pad, 1)
    labels_row = labels_f.reshape(1, n_pad)
    grid = (n_pad // block_rows,)

    # VMEM budget: resident bf16 keys + labels row + per-step (Br, Np) f32 logits
    # slab + small per-block column buffers.  Raise v5e's 16 MiB default; cap so
    # the request stays reasonable (on v7x also shrink block_rows for huge N).
    est = (n_pad * d * 2 + n_pad * 4
           + 4 * block_rows * n_pad
           + 2 * 4 * (3 * block_rows))
    vmem_limit = int(min(max(2 * est, 32 * 1024 * 1024), 112 * 1024 * 1024))

    kernel = functools.partial(
        _mpc_loss_kernel, block_rows=block_rows, n_valid=n, n_padded=n_pad,
        inv_temperature=1.0 / float(temperature))

    def _call(keys_pipeline_mode):
        if keys_pipeline_mode is not None:
            key_spec = pl.BlockSpec((n_pad, d), lambda i: (0, 0),
                                    pipeline_mode=keys_pipeline_mode)
        else:
            key_spec = pl.BlockSpec((n_pad, d), lambda i: (0, 0))
        return pl.pallas_call(
            kernel,
            out_shape=jax.ShapeDtypeStruct((n_pad, 1), jnp.float32),
            grid=grid,
            in_specs=[
                key_spec,                                            # resident keys
                pl.BlockSpec((block_rows, 1), lambda i: (i, 0)),     # label column
                pl.BlockSpec((1, n_pad), lambda i: (0, 0)),          # label row
                pl.BlockSpec((block_rows, 1), lambda i: (i, 0)),     # pos counts
            ],
            out_specs=pl.BlockSpec((block_rows, 1), lambda i: (i, 0)),
            compiler_params=pltpu.CompilerParams(
                dimension_semantics=("parallel",),
                vmem_limit_bytes=vmem_limit),
        )(feats_n, labels_col, labels_row, counts)

    try:
        # Single-buffer the grid-invariant resident keys (halves their VMEM
        # footprint; matters on v7x).  Fall back to the default double-buffered
        # pipeline if this JAX build rejects buffer_count=1 at the pallas_call level.
        per_row = _call(pl.Buffered(1))
    except Exception:
        per_row = _call(None)

    return jnp.sum(per_row[:n, 0]) / n


def reference_multi_pos_con_loss(feats, labels, temperature=1.0):
    """Plain-JAX transcription of the PyTorch module (source of truth)."""
    norms = jnp.sqrt(jnp.sum(feats * feats, axis=-1, keepdims=True))
    f = feats / jnp.maximum(norms, 1e-12)
    logits = jnp.matmul(f, f.T) / temperature
    labels = labels.astype(jnp.float32)
    diff = jnp.abs(labels[:, None] - labels[None, :])
    mask = (diff < 2.0).astype(jnp.float32)
    mask_sum = jnp.maximum(jnp.sum(mask, axis=1, keepdims=True), 1.0)
    p = mask / mask_sum
    log_prob = jax.nn.log_softmax(logits, axis=1)
    return -jnp.sum(p * log_prob, axis=1).mean()


if __name__ == "__main__":
    key = jax.random.PRNGKey(0)
    k1, k2, k3, k4 = jax.random.split(key, 4)

    # Case 1: small, no-padding path.
    N1, D1 = 16, 32
    feats1 = jax.random.normal(k1, (N1, D1), dtype=jnp.float32)
    labels1 = jax.random.randint(k2, (N1,), 0, 4).astype(jnp.float32)
    loss1 = jax.block_until_ready(multi_pos_con_loss(feats1, labels1, temperature=1.0))
    ref1 = reference_multi_pos_con_loss(feats1, labels1, temperature=1.0)
    assert loss1.shape == (), loss1.shape
    # bf16 MXU operands -> loose (but comfortable) tolerance vs. the f32 reference.
    assert jnp.allclose(loss1, ref1, atol=5e-2, rtol=5e-2), (loss1, ref1)

    # Case 2: N not a multiple of 8 -> exercises the padding / column-masking path.
    N2, D2 = 20, 32
    feats2 = jax.random.normal(k3, (N2, D2), dtype=jnp.float32)
    labels2 = jax.random.randint(k4, (N2,), 0, 5).astype(jnp.float32)
    loss2 = jax.block_until_ready(multi_pos_con_loss(feats2, labels2, temperature=0.5))
    ref2 = reference_multi_pos_con_loss(feats2, labels2, temperature=0.5)
    assert jnp.allclose(loss2, ref2, atol=5e-2, rtol=5e-2), (loss2, ref2)

    print("KERNEL_OK")
</pallas_src>

<mosaic_0001>
module attributes {stable_mosaic.version = 11 : i64} {
  func.func @_mpc_loss_kernel(%arg0: i32, %arg1: memref<16x32xbf16, #tpu.memory_space<vmem>>, %arg2: memref<16x1xf32, #tpu.memory_space<vmem>>, %arg3: memref<1x16xf32, #tpu.memory_space<vmem>>, %arg4: memref<16x1xf32, #tpu.memory_space<vmem>>, %arg5: memref<16x1xf32, #tpu.memory_space<vmem>>) attributes {dimension_semantics = [#tpu.dimension_semantics<parallel>], iteration_bounds = array<i64: 1>, scalar_prefetch = 0 : i64, scratch_operands = 0 : i64, tpu.core_type = #tpu.core_type<tc>, window_params = [{pipeline_mode = #tpu.pipeline_mode<synchronous>, transform_indices = @transform_0, window_bounds = array<i64: 16, 32>}, {transform_indices = @transform_1, window_bounds = array<i64: 16, 1>}, {pipeline_mode = #tpu.pipeline_mode<synchronous>, transform_indices = @transform_2, window_bounds = array<i64: 1, 16>}, {transform_indices = @transform_3, window_bounds = array<i64: 16, 1>}, {transform_indices = @transform_4, window_bounds = array<i64: 16, 1>}]} {
    %c16_i32 = arith.constant 16 : i32
    %0 = arith.muli %arg0, %c16_i32 : i32
    %1 = tpu.assume_multiple %0, 16 : i32
    %2 = arith.index_cast %1 : i32 to index
    %c0 = arith.constant 0 : index
    %3 = vector.load %arg1[%2, %c0] : memref<16x32xbf16, #tpu.memory_space<vmem>>, vector<16x32xbf16>
    %c0_0 = arith.constant 0 : index
    %c0_1 = arith.constant 0 : index
    %4 = vector.load %arg1[%c0_0, %c0_1] : memref<16x32xbf16, #tpu.memory_space<vmem>>, vector<16x32xbf16>
    %cst = arith.constant dense<0.000000e+00> : vector<16x16xf32>
    %5 = tpu.matmul %3, %4, %cst {dimension_numbers = #tpu.dot_dimension_numbers<[1], [1], [0], [0], [0, 0, 1, 0], [], []>} : vector<16x32xbf16>, vector<16x32xbf16>, vector<16x16xf32> -> vector<16x16xf32>
    %cst_2 = arith.constant 1.000000e+00 : f32
    %6 = vector.broadcast %cst_2 : f32 to vector<16x16xf32>
    %7 = arith.mulf %5, %6 : vector<16x16xf32>
    %cst_3 = arith.constant dense<0xFF800000> : vector<16xf32>
    %8 = vector.multi_reduction <maximumf>, %7, %cst_3 [1] : vector<16x16xf32> to vector<16xf32>
    %9 = vector.shape_cast %8 : vector<16xf32> to vector<16x1xf32>
    %10 = vector.broadcast %9 : vector<16x1xf32> to vector<16x16xf32>
    %11 = arith.subf %7, %10 : vector<16x16xf32>
    %12 = math.exp %11 : vector<16x16xf32>
    %cst_4 = arith.constant dense<0.000000e+00> : vector<16xf32>
    %13 = vector.multi_reduction <add>, %12, %cst_4 [1] : vector<16x16xf32> to vector<16xf32>
    %14 = vector.shape_cast %13 : vector<16xf32> to vector<16x1xf32>
    %15 = math.log %14 : vector<16x1xf32>
    %c0_5 = arith.constant 0 : index
    %c0_6 = arith.constant 0 : index
    %16 = vector.load %arg2[%c0_5, %c0_6] : memref<16x1xf32, #tpu.memory_space<vmem>>, vector<16x1xf32>
    %c0_7 = arith.constant 0 : index
    %c0_8 = arith.constant 0 : index
    %17 = vector.load %arg3[%c0_7, %c0_8] : memref<1x16xf32, #tpu.memory_space<vmem>>, vector<1x16xf32>
    %18 = vector.broadcast %16 : vector<16x1xf32> to vector<16x16xf32>
    %19 = vector.broadcast %17 : vector<1x16xf32> to vector<16x16xf32>
    %20 = arith.subf %18, %19 : vector<16x16xf32>
    %21 = math.absf %20 : vector<16x16xf32>
    %cst_9 = arith.constant 2.000000e+00 : f32
    %22 = vector.broadcast %cst_9 : f32 to vector<16x16xf32>
    %23 = arith.cmpf olt, %21, %22 : vector<16x16xf32>
    %cst_10 = arith.constant 0.000000e+00 : f32
    %24 = vector.broadcast %cst_10 : f32 to vector<16x16xf32>
    %25 = arith.select %23, %11, %24 : vector<16x16xi1>, vector<16x16xf32>
    %cst_11 = arith.constant dense<0.000000e+00> : vector<16xf32>
    %26 = vector.multi_reduction <add>, %25, %cst_11 [1] : vector<16x16xf32> to vector<16xf32>
    %27 = vector.shape_cast %26 : vector<16xf32> to vector<16x1xf32>
    %c0_12 = arith.constant 0 : index
    %c0_13 = arith.constant 0 : index
    %28 = vector.load %arg4[%c0_12, %c0_13] : memref<16x1xf32, #tpu.memory_space<vmem>>, vector<16x1xf32>
    %cst_14 = arith.constant 1.000000e+00 : f32
    %29 = vector.broadcast %cst_14 : f32 to vector<16x1xf32>
    %30 = arith.maximumf %28, %29 : vector<16x1xf32>
    %31 = tpu.reciprocal %30 : vector<16x1xf32> -> vector<16x1xf32>
    %32 = arith.mulf %15, %28 : vector<16x1xf32>
    %33 = arith.subf %32, %27 : vector<16x1xf32>
    %34 = arith.mulf %33, %31 : vector<16x1xf32>
    %c0_15 = arith.constant 0 : index
    %c0_16 = arith.constant 0 : index
    %35 = vector.load %arg5[%c0_15, %c0_16] : memref<16x1xf32, #tpu.memory_space<vmem>>, vector<16x1xf32>
    tpu.vector_store %arg5[%c0_15, %c0_16], %34 {strides = array<i32>} : memref<16x1xf32, #tpu.memory_space<vmem>>, vector<16x1xf32>,
    return
  }
  func.func @transform_0(%arg0: i32) -> (i32, i32) {
    %c0_i32 = arith.constant 0 : i32
    %c0_i32_0 = arith.constant 0 : i32
    %c0_i32_1 = arith.constant 0 : i32
    return %c0_i32, %c0_i32_0 : i32, i32
  }
  func.func @transform_1(%arg0: i32) -> (i32, i32) {
    %c0_i32 = arith.constant 0 : i32
    %c0_i32_0 = arith.constant 0 : i32
    return %arg0, %c0_i32 : i32, i32
  }
  func.func @transform_2(%arg0: i32) -> (i32, i32) {
    %c0_i32 = arith.constant 0 : i32
    %c0_i32_0 = arith.constant 0 : i32
    %c0_i32_1 = arith.constant 0 : i32
    return %c0_i32, %c0_i32_0 : i32, i32
  }
  func.func @transform_3(%arg0: i32) -> (i32, i32) {
    %c0_i32 = arith.constant 0 : i32
    %c0_i32_0 = arith.constant 0 : i32
    return %arg0, %c0_i32 : i32, i32
  }
  func.func @transform_4(%arg0: i32) -> (i32, i32) {
    %c0_i32 = arith.constant 0 : i32
    %c0_i32_0 = arith.constant 0 : i32
    return %arg0, %c0_i32 : i32, i32
  }
}

module attributes {stable_mosaic.version = 11 : i64} {
  func.func @_mpc_loss_kernel(%arg0: i32, %arg1: memref<16x32xbf16, #tpu.memory_space<vmem>>, %arg2: memref<16x1xf32, #tpu.memory_space<vmem>>, %arg3: memref<1x16xf32, #tpu.memory_space<vmem>>, %arg4: memref<16x1xf32, #tpu.memory_space<vmem>>, %arg5: memref<16x1xf32, #tpu.memory_space<vmem>>) attributes {dimension_semantics = [#tpu.dimension_semantics<parallel>], iteration_bounds = array<i64: 1>, scalar_prefetch = 0 : i64, scratch_operands = 0 : i64, tpu.core_type = #tpu.core_type<tc>, window_params = [{pipeline_mode = #tpu.pipeline_mode<synchronous>, transform_indices = @transform_0, window_bounds = array<i64: 16, 32>}, {transform_indices = @transform_1, window_bounds = array<i64: 16, 1>}, {pipeline_mode = #tpu.pipeline_mode<synchronous>, transform_indices = @transform_2, window_bounds = array<i64: 1, 16>}, {transform_indices = @transform_3, window_bounds = array<i64: 16, 1>}, {transform_indices = @transform_4, window_bounds = array<i64: 16, 1>}]} {
    %c16_i32 = arith.constant 16 : i32
    %0 = arith.muli %arg0, %c16_i32 : i32
    %1 = tpu.assume_multiple %0, 16 : i32
    %2 = arith.index_cast %1 : i32 to index
    %c0 = arith.constant 0 : index
    %3 = vector.load %arg1[%2, %c0] : memref<16x32xbf16, #tpu.memory_space<vmem>>, vector<16x32xbf16>
    %c0_0 = arith.constant 0 : index
    %c0_1 = arith.constant 0 : index
    %4 = vector.load %arg1[%c0_0, %c0_1] : memref<16x32xbf16, #tpu.memory_space<vmem>>, vector<16x32xbf16>
    %cst = arith.constant dense<0.000000e+00> : vector<16x16xf32>
    %5 = tpu.matmul %3, %4, %cst {dimension_numbers = #tpu.dot_dimension_numbers<[1], [1], [0], [0], [0, 0, 1, 0], [], []>} : vector<16x32xbf16>, vector<16x32xbf16>, vector<16x16xf32> -> vector<16x16xf32>
    %cst_2 = arith.constant 1.000000e+00 : f32
    %6 = vector.broadcast %cst_2 : f32 to vector<16x16xf32>
    %7 = arith.mulf %5, %6 : vector<16x16xf32>
    %cst_3 = arith.constant dense<0xFF800000> : vector<16xf32>
    %8 = vector.multi_reduction <maximumf>, %7, %cst_3 [1] : vector<16x16xf32> to vector<16xf32>
    %9 = vector.shape_cast %8 : vector<16xf32> to vector<16x1xf32>
    %10 = vector.broadcast %9 : vector<16x1xf32> to vector<16x16xf32>
    %11 = arith.subf %7, %10 : vector<16x16xf32>
    %12 = math.exp %11 : vector<16x16xf32>
    %cst_4 = arith.constant dense<0.000000e+00> : vector<16xf32>
    %13 = vector.multi_reduction <add>, %12, %cst_4 [1] : vector<16x16xf32> to vector<16xf32>
    %14 = vector.shape_cast %13 : vector<16xf32> to vector<16x1xf32>
    %15 = math.log %14 : vector<16x1xf32>
    %c0_5 = arith.constant 0 : index
    %c0_6 = arith.constant 0 : index
    %16 = vector.load %arg2[%c0_5, %c0_6] : memref<16x1xf32, #tpu.memory_space<vmem>>, vector<16x1xf32>
    %c0_7 = arith.constant 0 : index
    %c0_8 = arith.constant 0 : index
    %17 = vector.load %arg3[%c0_7, %c0_8] : memref<1x16xf32, #tpu.memory_space<vmem>>, vector<1x16xf32>
    %18 = vector.broadcast %16 : vector<16x1xf32> to vector<16x16xf32>
    %19 = vector.broadcast %17 : vector<1x16xf32> to vector<16x16xf32>
    %20 = arith.subf %18, %19 : vector<16x16xf32>
    %21 = math.absf %20 : vector<16x16xf32>
    %cst_9 = arith.constant 2.000000e+00 : f32
    %22 = vector.broadcast %cst_9 : f32 to vector<16x16xf32>
    %23 = arith.cmpf olt, %21, %22 : vector<16x16xf32>
    %cst_10 = arith.constant 0.000000e+00 : f32
    %24 = vector.broadcast %cst_10 : f32 to vector<16x16xf32>
    %25 = arith.select %23, %11, %24 : vector<16x16xi1>, vector<16x16xf32>
    %cst_11 = arith.constant dense<0.000000e+00> : vector<16xf32>
    %26 = vector.multi_reduction <add>, %25, %cst_11 [1] : vector<16x16xf32> to vector<16xf32>
    %27 = vector.shape_cast %26 : vector<16xf32> to vector<16x1xf32>
    %c0_12 = arith.constant 0 : index
    %c0_13 = arith.constant 0 : index
    %28 = vector.load %arg4[%c0_12, %c0_13] : memref<16x1xf32, #tpu.memory_space<vmem>>, vector<16x1xf32>
    %cst_14 = arith.constant 1.000000e+00 : f32
    %29 = vector.broadcast %cst_14 : f32 to vector<16x1xf32>
    %30 = arith.maximumf %28, %29 : vector<16x1xf32>
    %31 = tpu.reciprocal %30 : vector<16x1xf32> -> vector<16x1xf32>
    %32 = arith.mulf %15, %28 : vector<16x1xf32>
    %33 = arith.subf %32, %27 : vector<16x1xf32>
    %34 = arith.mulf %33, %31 : vector<16x1xf32>
    %c0_15 = arith.constant 0 : index
    %c0_16 = arith.constant 0 : index
    %35 = vector.load %arg5[%c0_15, %c0_16] : memref<16x1xf32, #tpu.memory_space<vmem>>, vector<16x1xf32>
    tpu.vector_store %arg5[%c0_15, %c0_16], %34 {strides = array<i32>} : memref<16x1xf32, #tpu.memory_space<vmem>>, vector<16x1xf32>,
    return
  }
  func.func @transform_0(%arg0: i32) -> (i32, i32) {
    %c0_i32 = arith.constant 0 : i32
    %c0_i32_0 = arith.constant 0 : i32
    %c0_i32_1 = arith.constant 0 : i32
    return %c0_i32, %c0_i32_0 : i32, i32
  }
  func.func @transform_1(%arg0: i32) -> (i32, i32) {
    %c0_i32 = arith.constant 0 : i32
    %c0_i32_0 = arith.constant 0 : i32
    return %arg0, %c0_i32 : i32, i32
  }
  func.func @transform_2(%arg0: i32) -> (i32, i32) {
    %c0_i32 = arith.constant 0 : i32
    %c0_i32_0 = arith.constant 0 : i32
    %c0_i32_1 = arith.constant 0 : i32
    return %c0_i32, %c0_i32_0 : i32, i32
  }
  func.func @transform_3(%arg0: i32) -> (i32, i32) {
    %c0_i32 = arith.constant 0 : i32
    %c0_i32_0 = arith.constant 0 : i32
    return %arg0, %c0_i32 : i32, i32
  }
  func.func @transform_4(%arg0: i32) -> (i32, i32) {
    %c0_i32 = arith.constant 0 : i32
    %c0_i32_0 = arith.constant 0 : i32
    return %arg0, %c0_i32 : i32, i32
  }
}

</mosaic_0001>

<llo_original>
// kernel: tpu_custom_call.1
$region0: #{tpu_custom_call.1}
  #allocation0 [shape = 'u32[]', space=smem, size = 0x4, offset = 0x4, fixed_abs, tag = 'smem constant byte address 0x4 - core index']
  #allocation1 [shape = 'u32[72,128]{1,0:T(1,128)}', space=vmem, size = 0x9000, scoped, tag = 'internal scratch']
  %s0 = inlined_call_operand.vmem [shape: bf16[16,32], index: 0, kind: input, shape index: {}]
  %s1 = inlined_call_operand.vmem [shape: f32[16,1], index: 1, kind: input, shape index: {}]
  %s2 = inlined_call_operand.vmem [shape: f32[1,16], index: 2, kind: input, shape index: {}]
  %s3 = inlined_call_operand.vmem [shape: f32[16,1], index: 3, kind: input, shape index: {}]
  %s4 = inlined_call_operand.vmem [shape: f32[16,1], index: 4, kind: output, shape index: {}]
  %s5 = sld [smem:[#allocation0]]
  $region26: #{tpu_custom_call.1} parent=0
    _
  %s7 = ssub.s32 1, %s5
  %s8 = scalar_select 0, %s7, %s5
  // Predicated region
  $region2: #{tpu_custom_call.1} parent=0 // pred_check
    _
  $region3: #{tpu_custom_call.1} parent=0 // pred_check_branch
    %10 = sbr.rel (0) target = $region5
  $region4: #{tpu_custom_call.1} parent=0 // pred_region
    _
  $region5: #{tpu_custom_call.1} parent=0 // pred_fallthru
    _
  // Predicated region
  $region6: #{tpu_custom_call.1} parent=0 // pred_check
    _
  $region7: #{tpu_custom_call.1} parent=0 // pred_check_branch
    %12 = sbr.rel (0) target = $region9
  $region8: #{tpu_custom_call.1} parent=0 // pred_region
    _
  $region9: #{tpu_custom_call.1} parent=0 // pred_fallthru
    _
  // Predicated region
  $region10: #{tpu_custom_call.1} parent=0 // pred_check
    _
  $region11: #{tpu_custom_call.1} parent=0 // pred_check_branch
    %14 = sbr.rel (0) target = $region13
  $region12: #{tpu_custom_call.1} parent=0 // pred_region
    _
  $region13: #{tpu_custom_call.1} parent=0 // pred_fallthru
    _
  // Predicated region
  $region14: #{tpu_custom_call.1} parent=0 // pred_check
    _
  $region15: #{tpu_custom_call.1} parent=0 // pred_check_branch
    %16 = sbr.rel (0) target = $region17
  $region16: #{tpu_custom_call.1} parent=0 // pred_region
    _
  $region17: #{tpu_custom_call.1} parent=0 // pred_fallthru
    _
  %s18 = smul.u32 0, 16
  %s19 = sshra.s32 %s18, 3
  %s20 = sand.u32 %s18, 7
  %s21 = smul.addr %s19, 4
  %s22 = scalar_lea.vmem %s0, %s21
  %v23 = vld [vmem:[%s22] sm:$0xf]
  %v24 = vld [vmem:[%s22 + $0x4] sm:$0xf]
  %v25 = vld [vmem:[%s0] sm:$0xf]
  %v26 = vld [vmem:[%s0 + $0x4] sm:$0xf]
  %v29 = vunpack.c.l.b16 %v23
  %v30 = vunpack.c.l.b16 %v24
  %v31 = vpack.c.b16 %v30, %v29
  %v34 = vunpack.c.l.b16 %v25
  %v35 = vunpack.c.l.b16 %v26
  %v36 = vpack.c.b16 %v35, %v34
  %vm37 = vcmask 261120
  %v39 = vsel %vm37, %v31, 0
  %v42 = vsel %vm37, %v36, 0
  %44 = vmatpush.bf16.xpose.msra.mxu0 0
  %45 = vmatpush.bf16.xpose.msra.mxu0 0
  %46 = vmatpush.bf16.xpose.msra.mxu0 0
  %47 = vmatpush.bf16.xpose.msra.mxu0 0
  %48 = vmatpush.bf16.xpose.msra.mxu0 0
  %49 = vmatpush.bf16.xpose.msra.mxu0 0
  %50 = vmatpush.bf16.xpose.msra.mxu0 0
  %51 = vmatpush.bf16.xpose.msra.mxu0 %v42
  %52 = vmatmul.bf16.gmra.mxu0 %v39
  %v53 = vpop.f32.mrf.mxu0
  %v54 = vadd.f32 0.0, %v53
  %v55 = vpop.f32.mrf.mxu0
  %v56 = vadd.f32 0.0, %v55
  %57 = vdwg.mxu0
  %vm58 = vcmask 130048
  %v59 = vsel %vm58, %v54, -inf
  %60 = vmax.xlane.f32.xlu0 %v59
  %v61 = vpop.xlane.xlu0 %60
  %v62 = vsel %vm58, %v56, -inf
  %63 = vmax.xlane.f32.xlu0 %v62
  %v64 = vpop.xlane.xlu0 %63
  %v65 = vsub.f32 %v54, %v61
  %v66 = vsub.f32 %v56, %v64
  %v67 = vmul.f32 %v65, 1.442695
  %v68 = vpow.pop %v67
  %v69 = vmul.f32 %v66, 1.442695
  %v70 = vpow.pop %v69
  %v71 = vsel %vm58, %v68, 0.0
  %72 = vadd.xlane.f32.xlu0 %v71
  %v73 = vpop.xlane.xlu0 %72
  %v74 = vsel %vm58, %v70, 0.0
  %75 = vadd.xlane.f32.xlu0 %v74
  %v76 = vpop.xlane.xlu0 %75
  %v77 = vlog2.pop %v73
  %v78 = vmul.f32 %v77, 0.6931472
  %v79 = vlog2.pop %v76
  %v80 = vmul.f32 %v79, 0.6931472
  %v81 = vld [vmem:[%s1] sm:$0xff]
  %v82 = vld [vmem:[%s1 + $0x8] sm:$0xff]
  %v83 = vld [vmem:[%s2] sm:$0x1]
  %85 = vset.pattern.permute.xlu0 0
  %86 = vperm.xlu0 %85, %v81
  %v87 = vpop.permute.xlu0 %86
  %90 = vset.pattern.permute.xlu0 0
  %91 = vperm.xlu0 %90, %v82
  %v92 = vpop.permute.xlu0 %91
  %v95 = vperm.slane %v83, 0
  %v97 = vsub.f32 %v87, %v95
  %v98 = vsub.f32 %v92, %v95
  %v99 = vand.u32 2147483647, %v97
  %v100 = vand.u32 2147483647, %v98
  %vm101 = vcmp.lt.f32.partialorder %v99, 2.0
  %vm102 = vcmp.lt.f32.partialorder %v100, 2.0
  %v103 = vsel %vm101, %v65, 0.0
  %v104 = vsel %vm102, %v66, 0.0
  %v105 = vsel %vm58, %v103, 0.0
  %106 = vadd.xlane.f32.xlu0 %v105
  %v107 = vpop.xlane.xlu0 %106
  %v108 = vsel %vm58, %v104, 0.0
  %109 = vadd.xlane.f32.xlu0 %v108
  %v110 = vpop.xlane.xlu0 %109
  %v111 = vld [vmem:[%s3] sm:$0xff]
  %v112 = vld [vmem:[%s3 + $0x8] sm:$0xff]
  %v113 = vmax.f32 %v111, 1.0
  %v114 = vmax.f32 %v112, 1.0
  %v115 = vrcp.pop %v113
  %v116 = vmul.f32 %v113, %v115
  %v117 = vsub.f32 1.0, %v116
  %v118 = vmul.f32 %v115, %v117
  %v119 = vadd.f32 %v115, %v118
  %vm120 = vweird.f32 %v113
  %vm121 = vweird.f32 %v115
  %vm122 = vmor %vm120, %vm121
  %v123 = vsel %vm122, %v115, %v119
  %v124 = vand.u32 2147483647, %v113
  %vm125 = vcmp.eq.f32.partialorder %v124, 8.507059e+37
  %v126 = vand.u32 %v113, 2147483648
  %v127 = vor.u32 1.1754944e-38, %v126
  %v128 = vsel %vm125, %v127, %v123
  %v129 = vrcp.pop %v114
  %v130 = vmul.f32 %v114, %v129
  %v131 = vsub.f32 1.0, %v130
  %v132 = vmul.f32 %v129, %v131
  %v133 = vadd.f32 %v129, %v132
  %vm134 = vweird.f32 %v114
  %vm135 = vweird.f32 %v129
  %vm136 = vmor %vm134, %vm135
  %v137 = vsel %vm136, %v129, %v133
  %v138 = vand.u32 2147483647, %v114
  %vm139 = vcmp.eq.f32.partialorder %v138, 8.507059e+37
  %v140 = vand.u32 %v114, 2147483648
  %v141 = vor.u32 1.1754944e-38, %v140
  %v142 = vsel %vm139, %v141, %v137
  %v143 = vmul.f32 %v78, %v111
  %v144 = vmul.f32 %v80, %v112
  %v145 = vsub.f32 %v143, %v107
  %v146 = vsub.f32 %v144, %v110
  %v147 = vmul.f32 %v145, %v128
  %v148 = vmul.f32 %v146, %v142
  %vm149 = vcmask 7168
  %150 = vst.msk [vmem:[%s4] sm:$0xff] %vm149, %v147
  %151 = vst.msk [vmem:[%s4 + $0x8] sm:$0xff] %vm149, %v148
  // Predicated region
  $region18: #{tpu_custom_call.1} parent=0 // pred_check
    _
  $region19: #{tpu_custom_call.1} parent=0 // pred_check_branch
    %153 = sbr.rel (0) target = $region21
  $region20: #{tpu_custom_call.1} parent=0 // pred_region
    _
  $region21: #{tpu_custom_call.1} parent=0 // pred_fallthru
    _
  // Predicated region
  $region22: #{tpu_custom_call.1} parent=0 // pred_check
    _
  $region23: #{tpu_custom_call.1} parent=0 // pred_check_branch
    %155 = sbr.rel (0) target = $region25
  $region24: #{tpu_custom_call.1} parent=0 // pred_region
    _
  $region25: #{tpu_custom_call.1} parent=0 // pred_fallthru
    _

// kernel: tpu_custom_call.1
$region0: #{tpu_custom_call.1}
  #allocation0 [shape = 'u32[]', space=smem, size = 0x4, offset = 0x4, fixed_abs, tag = 'smem constant byte address 0x4 - core index']
  #allocation1 [shape = 'u32[72,128]{1,0:T(1,128)}', space=vmem, size = 0x9000, scoped, tag = 'internal scratch']
  %s0 = inlined_call_operand.vmem [shape: bf16[16,32], index: 0, kind: input, shape index: {}]
  %s1 = inlined_call_operand.vmem [shape: f32[16,1], index: 1, kind: input, shape index: {}]
  %s2 = inlined_call_operand.vmem [shape: f32[1,16], index: 2, kind: input, shape index: {}]
  %s3 = inlined_call_operand.vmem [shape: f32[16,1], index: 3, kind: input, shape index: {}]
  %s4 = inlined_call_operand.vmem [shape: f32[16,1], index: 4, kind: output, shape index: {}]
  %s5 = sld [smem:[#allocation0]]
  $region26: #{tpu_custom_call.1} parent=0
    _
  %s7 = ssub.s32 1, %s5
  %s8 = scalar_select 0, %s7, %s5
  // Predicated region
  $region2: #{tpu_custom_call.1} parent=0 // pred_check
    _
  $region3: #{tpu_custom_call.1} parent=0 // pred_check_branch
    %10 = sbr.rel (0) target = $region5
  $region4: #{tpu_custom_call.1} parent=0 // pred_region
    _
  $region5: #{tpu_custom_call.1} parent=0 // pred_fallthru
    _
  // Predicated region
  $region6: #{tpu_custom_call.1} parent=0 // pred_check
    _
  $region7: #{tpu_custom_call.1} parent=0 // pred_check_branch
    %12 = sbr.rel (0) target = $region9
  $region8: #{tpu_custom_call.1} parent=0 // pred_region
    _
  $region9: #{tpu_custom_call.1} parent=0 // pred_fallthru
    _
  // Predicated region
  $region10: #{tpu_custom_call.1} parent=0 // pred_check
    _
  $region11: #{tpu_custom_call.1} parent=0 // pred_check_branch
    %14 = sbr.rel (0) target = $region13
  $region12: #{tpu_custom_call.1} parent=0 // pred_region
    _
  $region13: #{tpu_custom_call.1} parent=0 // pred_fallthru
    _
  // Predicated region
  $region14: #{tpu_custom_call.1} parent=0 // pred_check
    _
  $region15: #{tpu_custom_call.1} parent=0 // pred_check_branch
    %16 = sbr.rel (0) target = $region17
  $region16: #{tpu_custom_call.1} parent=0 // pred_region
    _
  $region17: #{tpu_custom_call.1} parent=0 // pred_fallthru
    _
  %s18 = smul.u32 0, 16
  %s19 = sshra.s32 %s18, 3
  %s20 = sand.u32 %s18, 7
  %s21 = smul.addr %s19, 4
  %s22 = scalar_lea.vmem %s0, %s21
  %v23 = vld [vmem:[%s22] sm:$0xf]
  %v24 = vld [vmem:[%s22 + $0x4] sm:$0xf]
  %v25 = vld [vmem:[%s0] sm:$0xf]
  %v26 = vld [vmem:[%s0 + $0x4] sm:$0xf]
  %v29 = vunpack.c.l.b16 %v23
  %v30 = vunpack.c.l.b16 %v24
  %v31 = vpack.c.b16 %v30, %v29
  %v34 = vunpack.c.l.b16 %v25
  %v35 = vunpack.c.l.b16 %v26
  %v36 = vpack.c.b16 %v35, %v34
  %vm37 = vcmask 261120
  %v39 = vsel %vm37, %v31, 0
  %v42 = vsel %vm37, %v36, 0
  %44 = vmatpush.bf16.xpose.msra.mxu0 0
  %45 = vmatpush.bf16.xpose.msra.mxu0 0
  %46 = vmatpush.bf16.xpose.msra.mxu0 0
  %47 = vmatpush.bf16.xpose.msra.mxu0 0
  %48 = vmatpush.bf16.xpose.msra.mxu0 0
  %49 = vmatpush.bf16.xpose.msra.mxu0 0
  %50 = vmatpush.bf16.xpose.msra.mxu0 0
  %51 = vmatpush.bf16.xpose.msra.mxu0 %v42
  %52 = vmatmul.bf16.gmra.mxu0 %v39
  %v53 = vpop.f32.mrf.mxu0
  %v54 = vadd.f32 0.0, %v53
  %v55 = vpop.f32.mrf.mxu0
  %v56 = vadd.f32 0.0, %v55
  %57 = vdwg.mxu0
  %vm58 = vcmask 130048
  %v59 = vsel %vm58, %v54, -inf
  %60 = vmax.xlane.f32.xlu0 %v59
  %v61 = vpop.xlane.xlu0 %60
  %v62 = vsel %vm58, %v56, -inf
  %63 = vmax.xlane.f32.xlu0 %v62
  %v64 = vpop.xlane.xlu0 %63
  %v65 = vsub.f32 %v54, %v61
  %v66 = vsub.f32 %v56, %v64
  %v67 = vmul.f32 %v65, 1.442695
  %v68 = vpow.pop %v67
  %v69 = vmul.f32 %v66, 1.442695
  %v70 = vpow.pop %v69
  %v71 = vsel %vm58, %v68, 0.0
  %72 = vadd.xlane.f32.xlu0 %v71
  %v73 = vpop.xlane.xlu0 %72
  %v74 = vsel %vm58, %v70, 0.0
  %75 = vadd.xlane.f32.xlu0 %v74
  %v76 = vpop.xlane.xlu0 %75
  %v77 = vlog2.pop %v73
  %v78 = vmul.f32 %v77, 0.6931472
  %v79 = vlog2.pop %v76
  %v80 = vmul.f32 %v79, 0.6931472
  %v81 = vld [vmem:[%s1] sm:$0xff]
  %v82 = vld [vmem:[%s1 + $0x8] sm:$0xff]
  %v83 = vld [vmem:[%s2] sm:$0x1]
  %85 = vset.pattern.permute.xlu0 0
  %86 = vperm.xlu0 %85, %v81
  %v87 = vpop.permute.xlu0 %86
  %90 = vset.pattern.permute.xlu0 0
  %91 = vperm.xlu0 %90, %v82
  %v92 = vpop.permute.xlu0 %91
  %v95 = vperm.slane %v83, 0
  %v97 = vsub.f32 %v87, %v95
  %v98 = vsub.f32 %v92, %v95
  %v99 = vand.u32 2147483647, %v97
  %v100 = vand.u32 2147483647, %v98
  %vm101 = vcmp.lt.f32.partialorder %v99, 2.0
  %vm102 = vcmp.lt.f32.partialorder %v100, 2.0
  %v103 = vsel %vm101, %v65, 0.0
  %v104 = vsel %vm102, %v66, 0.0
  %v105 = vsel %vm58, %v103, 0.0
  %106 = vadd.xlane.f32.xlu0 %v105
  %v107 = vpop.xlane.xlu0 %106
  %v108 = vsel %vm58, %v104, 0.0
  %109 = vadd.xlane.f32.xlu0 %v108
  %v110 = vpop.xlane.xlu0 %109
  %v111 = vld [vmem:[%s3] sm:$0xff]
  %v112 = vld [vmem:[%s3 + $0x8] sm:$0xff]
  %v113 = vmax.f32 %v111, 1.0
  %v114 = vmax.f32 %v112, 1.0
  %v115 = vrcp.pop %v113
  %v116 = vmul.f32 %v113, %v115
  %v117 = vsub.f32 1.0, %v116
  %v118 = vmul.f32 %v115, %v117
  %v119 = vadd.f32 %v115, %v118
  %vm120 = vweird.f32 %v113
  %vm121 = vweird.f32 %v115
  %vm122 = vmor %vm120, %vm121
  %v123 = vsel %vm122, %v115, %v119
  %v124 = vand.u32 2147483647, %v113
  %vm125 = vcmp.eq.f32.partialorder %v124, 8.507059e+37
  %v126 = vand.u32 %v113, 2147483648
  %v127 = vor.u32 1.1754944e-38, %v126
  %v128 = vsel %vm125, %v127, %v123
  %v129 = vrcp.pop %v114
  %v130 = vmul.f32 %v114, %v129
  %v131 = vsub.f32 1.0, %v130
  %v132 = vmul.f32 %v129, %v131
  %v133 = vadd.f32 %v129, %v132
  %vm134 = vweird.f32 %v114
  %vm135 = vweird.f32 %v129
  %vm136 = vmor %vm134, %vm135
  %v137 = vsel %vm136, %v129, %v133
  %v138 = vand.u32 2147483647, %v114
  %vm139 = vcmp.eq.f32.partialorder %v138, 8.507059e+37
  %v140 = vand.u32 %v114, 2147483648
  %v141 = vor.u32 1.1754944e-38, %v140
  %v142 = vsel %vm139, %v141, %v137
  %v143 = vmul.f32 %v78, %v111
  %v144 = vmul.f32 %v80, %v112
  %v145 = vsub.f32 %v143, %v107
  %v146 = vsub.f32 %v144, %v110
  %v147 = vmul.f32 %v145, %v128
  %v148 = vmul.f32 %v146, %v142
  %vm149 = vcmask 7168
  %150 = vst.msk [vmem:[%s4] sm:$0xff] %vm149, %v147
  %151 = vst.msk [vmem:[%s4 + $0x8] sm:$0xff] %vm149, %v148
  // Predicated region
  $region18: #{tpu_custom_call.1} parent=0 // pred_check
    _
  $region19: #{tpu_custom_call.1} parent=0 // pred_check_branch
    %153 = sbr.rel (0) target = $region21
  $region20: #{tpu_custom_call.1} parent=0 // pred_region
    _
  $region21: #{tpu_custom_call.1} parent=0 // pred_fallthru
    _
  // Predicated region
  $region22: #{tpu_custom_call.1} parent=0 // pred_check
    _
  $region23: #{tpu_custom_call.1} parent=0 // pred_check_branch
    %155 = sbr.rel (0) target = $region25
  $region24: #{tpu_custom_call.1} parent=0 // pred_region
    _
  $region25: #{tpu_custom_call.1} parent=0 // pred_fallthru
    _

</llo_original>
